<compile_context>
chip_gen: v5e
topology: v5e:2x2
jax: 0.10.0
libtpu: 0.0.40
codegen_flags: <defaults>
</compile_context>

<pallas_src>
import functools

import jax
import jax.numpy as jnp
from jax.experimental import pallas as pl
from jax.experimental.pallas import tpu as pltpu


def _round_up(x, m):
    return ((x + m - 1) // m) * m


def _vmem_budgets():
    """Per-generation VMEM sizing: (tile budget, scoped limit) in bytes.

    128-MiB parts (v5e/v6e): budget ~76 MiB, limit 96 MiB.
    64-MiB parts (v7x):      budget ~38 MiB, limit 48 MiB.
    Falls back to the conservative (v7x-sized) numbers if the query fails.
    """
    try:
        cap = getattr(pltpu.get_tpu_info(), "vmem_capacity_bytes", None)
    except Exception:  # pragma: no cover - defensive on exotic backends
        cap = None
    if not cap or cap <= 0:
        cap = 64 * 1024 * 1024
    limit = int(cap) * 3 // 4
    budget = int(cap) * 6 // 10
    return budget, limit


def _linear_kernel(x_ref, w_ref, b_ref, o_ref, *, compute_dtype):
    x = x_ref[...]
    if compute_dtype is not None and x.dtype != compute_dtype:
        # Cast inside the kernel (VPU work, overlapped with DMA) instead of a
        # separate un-fused XLA convert that would add a full extra HBM
        # read+write pass over the x slab.
        x = x.astype(compute_dtype)
    acc = jnp.dot(x, w_ref[...], preferred_element_type=jnp.float32)
    o_ref[...] = (acc + b_ref[...]).astype(o_ref.dtype)


def _pick_tiles(M, K, N, x_bytes, w_bytes, out_bytes, budget):
    """Choose (tm, tn): sublane/lane-aligned tiles filling the VMEM budget."""
    # N tile: keep the whole weight resident (single DMA, constant block
    # index, single-buffered) when it fits half the budget; otherwise tile N
    # with a 256-lane floor (full MXU output width on v6e / v7x).
    if K * N * w_bytes <= budget // 2:
        tn = N
        w_tile_bytes = K * N * w_bytes               # single-buffered
    else:
        tn = 1024
        while tn > 256 and 2 * K * tn * w_bytes > budget // 2:
            tn //= 2
        tn = min(tn, _round_up(N, 128))
        w_tile_bytes = 2 * K * tn * w_bytes          # double-buffered
    eff_tn = min(tn, N)

    # M tile: no artificial cap — grow until the double-buffered x / out tiles
    # fill the remaining budget.  Ragged last blocks are handled by the grid
    # (OOB rows only feed OOB output rows, whose writes are dropped).
    per_row = 2 * (K * x_bytes + eff_tn * out_bytes)
    tm = max((budget - w_tile_bytes) // per_row, 8)
    tm = max((tm // 8) * 8, 8)
    if tm >= M:
        if M >= 256:
            # Keep >=2 M blocks so dimension_semantics=("parallel", ...) can
            # shard the row tiles across both v7x TensorCores.
            tm = _round_up((M + 1) // 2, 8)
        else:
            tm = _round_up(M, 8)
    return tm, tn


def _linear_pallas(x2d, w, b, *, out_dtype=None, compute_dtype=None):
    """y = x2d @ w + b with x2d: (M, K), w: (K, N), b: (N,) or (1, N)."""
    M, K = x2d.shape
    Kw, N = w.shape
    assert Kw == K, (Kw, K)
    out_dtype = x2d.dtype if out_dtype is None else out_dtype

    # Parameters are tiny relative to the x slab; prepare them host-side.
    b = jnp.asarray(b, dtype=jnp.float32).reshape(1, -1)     # added to f32 acc
    if compute_dtype is not None:
        w = w.astype(compute_dtype)

    # Lane-dense output for small heads (N < 128): pad the weight/bias once to
    # 128 lanes so stores are unmasked vst, and slice the result lazily after.
    n_out = N
    if N < 128:
        w = jnp.pad(w, ((0, 0), (0, 128 - N)))
        b = jnp.pad(b, ((0, 0), (0, 128 - N)))
        N = 128

    x_bytes = jnp.dtype(x2d.dtype).itemsize
    w_bytes = jnp.dtype(w.dtype).itemsize
    out_bytes = jnp.dtype(out_dtype).itemsize
    budget, vmem_limit = _vmem_budgets()
    tm, tn = _pick_tiles(M, K, N, x_bytes, w_bytes, out_bytes, budget)

    nm, nn = pl.cdiv(M, tm), pl.cdiv(N, tn)

    # Grid ordering: put inner the axis whose operand re-streaming is cheaper
    # (j inner re-reads the weight nm times; i inner re-reads x nn times).
    # With a resident weight (nn == 1) the orderings coincide.
    x_total = M * K * x_bytes
    w_total = K * N * w_bytes
    m_outer = (x_total + nm * w_total) <= (w_total + nn * x_total)
    if m_outer:
        grid = (nm, nn)
        x_map = lambda i, j: (i, 0)
        w_map = lambda i, j: (0, j)
        o_map = lambda i, j: (i, j)
    else:
        grid = (nn, nm)
        x_map = lambda j, i: (i, 0)
        w_map = lambda j, i: (0, j)
        o_map = lambda j, i: (i, j)

    # Single-buffer weight / bias when their block index never changes —
    # halves their VMEM footprint, which is what bounds how large tm can go.
    const_kwargs = {}
    if nn == 1 and hasattr(pl, "Buffered"):
        const_kwargs = dict(pipeline_mode=pl.Buffered(1))

    if nn == 1:
        x_reads, w_reads = 1, 1
    elif m_outer:
        x_reads, w_reads = 1, nm
    else:
        x_reads, w_reads = nn, 1
    cost = pl.CostEstimate(
        flops=2 * M * K * N,
        transcendentals=0,
        bytes_accessed=(x_reads * M * K * x_bytes + w_reads * K * N * w_bytes
                        + N * 4 + M * N * out_bytes),
    )

    kernel = functools.partial(_linear_kernel, compute_dtype=compute_dtype)

    # TODO(synk): for very wide in_features (K*tm no longer fits VMEM), add a
    # K grid axis with an f32 accumulator scratch instead of shrinking tm.
    y = pl.pallas_call(
        kernel,
        out_shape=jax.ShapeDtypeStruct((M, N), out_dtype),
        grid_spec=pltpu.PrefetchScalarGridSpec(
            num_scalar_prefetch=0,
            grid=grid,
            in_specs=[
                pl.BlockSpec((tm, K), x_map),                    # x tile
                pl.BlockSpec((K, tn), w_map, **const_kwargs),    # weight
                pl.BlockSpec((1, tn), w_map, **const_kwargs),    # bias
            ],
            out_specs=pl.BlockSpec((tm, tn), o_map),
        ),
        compiler_params=pltpu.CompilerParams(
            dimension_semantics=("parallel", "parallel"),
            vmem_limit_bytes=vmem_limit,
        ),
        cost_estimate=cost,
    )(x2d, w, b)

    if n_out != N:
        y = y[:, :n_out]                    # lazy slice of the padded lanes
    return y


def time_distributed_linear(x, w, b, *, batch_first=False, compute_dtype=None,
                            out_dtype=None):
    """Mirrors TimeDistributed.forward with module = nn.Linear.

    x: at least 1D, last dim = in_features.
    w: (in_features, out_features)   (torch weight transposed)
    b: (out_features,) or (1, out_features)
    compute_dtype: optional MXU dtype (e.g. jnp.bfloat16); x is cast inside
      the kernel, accumulation stays f32.
    out_dtype: optional output dtype (defaults to x.dtype).
    """
    out_dtype = x.dtype if out_dtype is None else out_dtype
    n_out = w.shape[1]

    x2d = x.reshape(-1, x.shape[-1])                 # (-1, in_features)
    y = _linear_pallas(x2d, w, b, out_dtype=out_dtype, compute_dtype=compute_dtype)

    if x.ndim <= 2:
        return y.reshape(x.shape[:-1] + (n_out,))
    if batch_first:
        return y.reshape(x.shape[0], -1, n_out)      # (batch, T, out)
    return y.reshape(-1, x.shape[1], n_out)          # (T, batch, out)


if __name__ == "__main__":
    key = jax.random.PRNGKey(0)
    k_x, k_w, k_b = jax.random.split(key, 3)

    T, B, F_IN, F_OUT = 8, 2, 32, 32

    x = jax.random.normal(k_x, (T, B, F_IN), dtype=jnp.float32)
    w = jax.random.normal(k_w, (F_IN, F_OUT), dtype=jnp.float32) * 0.1
    b = jax.random.normal(k_b, (1, F_OUT), dtype=jnp.float32) * 0.1

    # Reference (plain JAX), same semantics as the PyTorch module.
    y_ref = (x.reshape(-1, F_IN) @ w + b).reshape(-1, B, F_OUT)

    # Exact f32 path (default: matches the PyTorch module semantics).
    y = jax.block_until_ready(time_distributed_linear(x, w, b, batch_first=False))
    assert y.shape == (T, B, F_OUT)
    assert jnp.allclose(y, y_ref, atol=1e-5, rtol=1e-5)

    # bf16-compute path: x cast in-kernel, f32 accumulation, f32 output.
    y_bf16 = jax.block_until_ready(
        time_distributed_linear(x, w, b, compute_dtype=jnp.bfloat16))
    assert y_bf16.dtype == jnp.float32
    assert jnp.allclose(y_bf16, y_ref, atol=5e-2, rtol=5e-2)

    # Optional bf16 output (halves writeback traffic for downstream-bf16 nets).
    y_obf16 = jax.block_until_ready(
        time_distributed_linear(x, w, b, out_dtype=jnp.bfloat16))
    assert y_obf16.dtype == jnp.bfloat16

    # batch_first branch shape check.
    y_bfirst = jax.block_until_ready(
        time_distributed_linear(x, w, b, batch_first=True))
    assert y_bfirst.shape == (T, B, F_OUT)

    # <=2D branch (module applies Linear directly).
    x2 = x[0]                                       # (B, F_IN)
    y2 = jax.block_until_ready(time_distributed_linear(x2, w, b))
    assert jnp.allclose(y2, x2 @ w + b, atol=1e-5, rtol=1e-5)

    print("KERNEL_OK")
</pallas_src>

<mosaic_0001>
module attributes {stable_mosaic.version = 11 : i64} {
  func.func @_linear_kernel(%arg0: i32, %arg1: i32, %arg2: memref<16x32xf32, #tpu.memory_space<vmem>>, %arg3: memref<32x128xf32, #tpu.memory_space<vmem>>, %arg4: memref<1x128xf32, #tpu.memory_space<vmem>>, %arg5: memref<16x128xf32, #tpu.memory_space<vmem>>) attributes {dimension_semantics = [#tpu.dimension_semantics<parallel>, #tpu.dimension_semantics<parallel>], iteration_bounds = array<i64: 1, 1>, scalar_prefetch = 0 : i64, scratch_operands = 0 : i64, tpu.core_type = #tpu.core_type<tc>, window_params = [{transform_indices = @transform_0, window_bounds = array<i64: 16, 32>}, {pipeline_mode = #tpu.pipeline_mode<synchronous>, transform_indices = @transform_1, window_bounds = array<i64: 32, 128>}, {pipeline_mode = #tpu.pipeline_mode<synchronous>, transform_indices = @transform_2, window_bounds = array<i64: 1, 128>}, {transform_indices = @transform_3, window_bounds = array<i64: 16, 128>}]} {
    %c0 = arith.constant 0 : index
    %c0_0 = arith.constant 0 : index
    %0 = vector.load %arg2[%c0, %c0_0] : memref<16x32xf32, #tpu.memory_space<vmem>>, vector<16x32xf32>
    %c0_1 = arith.constant 0 : index
    %c0_2 = arith.constant 0 : index
    %1 = vector.load %arg3[%c0_1, %c0_2] : memref<32x128xf32, #tpu.memory_space<vmem>>, vector<32x128xf32>
    %cst = arith.constant dense<0.000000e+00> : vector<16x128xf32>
    %2 = tpu.matmul %0, %1, %cst {dimension_numbers = #tpu.dot_dimension_numbers<[1], [0], [0], [1], [0, 0, 1, 1], [], []>} : vector<16x32xf32>, vector<32x128xf32>, vector<16x128xf32> -> vector<16x128xf32>
    %c0_3 = arith.constant 0 : index
    %c0_4 = arith.constant 0 : index
    %3 = vector.load %arg4[%c0_3, %c0_4] : memref<1x128xf32, #tpu.memory_space<vmem>>, vector<1x128xf32>
    %4 = vector.broadcast %3 : vector<1x128xf32> to vector<16x128xf32>
    %5 = arith.addf %2, %4 : vector<16x128xf32>
    %c0_5 = arith.constant 0 : index
    %c0_6 = arith.constant 0 : index
    %6 = vector.load %arg5[%c0_5, %c0_6] : memref<16x128xf32, #tpu.memory_space<vmem>>, vector<16x128xf32>
    tpu.vector_store %arg5[%c0_5, %c0_6], %5 {strides = array<i32>} : memref<16x128xf32, #tpu.memory_space<vmem>>, vector<16x128xf32>,
    return
  }
  func.func @transform_0(%arg0: i32, %arg1: i32) -> (i32, i32) {
    %c0_i32 = arith.constant 0 : i32
    %c0_i32_0 = arith.constant 0 : i32
    return %arg0, %c0_i32 : i32, i32
  }
  func.func @transform_1(%arg0: i32, %arg1: i32) -> (i32, i32) {
    %c0_i32 = arith.constant 0 : i32
    %c0_i32_0 = arith.constant 0 : i32
    return %c0_i32, %arg1 : i32, i32
  }
  func.func @transform_2(%arg0: i32, %arg1: i32) -> (i32, i32) {
    %c0_i32 = arith.constant 0 : i32
    %c0_i32_0 = arith.constant 0 : i32
    return %c0_i32, %arg1 : i32, i32
  }
  func.func @transform_3(%arg0: i32, %arg1: i32) -> (i32, i32) {
    %c0_i32 = arith.constant 0 : i32
    return %arg0, %arg1 : i32, i32
  }
}

</mosaic_0001>

<llo_original>
// kernel: tpu_custom_call.1
$region0: #{tpu_custom_call.1}
  #allocation0 [shape = 'u32[]', space=smem, size = 0x4, offset = 0x4, fixed_abs, tag = 'smem constant byte address 0x4 - core index']
  #allocation1 [shape = 'u32[72,128]{1,0:T(1,128)}', space=vmem, size = 0x9000, scoped, tag = 'internal scratch']
  %s0 = inlined_call_operand.hbm [shape: f32[16,32], index: 0, kind: input, shape index: {}]
  %s1 = inlined_call_operand.hbm [shape: f32[32,128], index: 1, kind: input, shape index: {}]
  %s2 = inlined_call_operand.vmem [shape: f32[1,128], index: 2, kind: input, shape index: {}]
  %s3 = inlined_call_operand.hbm [shape: f32[16,128], index: 3, kind: output, shape index: {}]
  %s4 = sld [smem:[#allocation0]]
  $region30: #{tpu_custom_call.1} parent=0
    _
  %s6 = ssub.s32 1, %s4
  %s7 = scalar_select 0, %s6, %s4
  $region1: #{tpu_custom_call.1} parent=0
    #allocation2 [shape = 'u8[8192]{0}', space=vmem, size = 0x2000, scoped, tag = 'input window, operand 0, single buffered']
    #allocation3 [shape = 's32[1]{0}', space=sflag, size = 0x4, scoped, tag = 'scoped memory for tpu_custom_call.1']
    #allocation4 [shape = 's32[1]{0}', space=sflag, size = 0x4, scoped, tag = 'scoped memory for tpu_custom_call.1']
    #allocation5 [shape = 'u8[16384]{0}', space=vmem, size = 0x4000, scoped, tag = 'input window, operand 1, single buffered']
    #allocation6 [shape = 's32[1]{0}', space=sflag, size = 0x4, scoped, tag = 'scoped memory for tpu_custom_call.1']
    #allocation7 [shape = 'u8[8192]{0}', space=vmem, size = 0x2000, scoped, tag = 'output window, operand 0, single buffered']
    %8 = vsyncpa [#allocation3], 0
    %9 = vsyncpa [#allocation6], 0
    %10 = vsyncpa [#allocation4], 0
    // Predicated region
    $region2: #{tpu_custom_call.1} parent=1 // pred_check
      _
    $region3: #{tpu_custom_call.1} parent=1 // pred_check_branch
      %12 = sbr.rel (0) target = $region5
    $region4: #{tpu_custom_call.1} parent=1 // pred_region
      %14 = vsyncadd [#allocation3], 0
      %s15 = sshll.u32 %s0, 4
      %s16 = int_to_ptr.hbm [resolvable:$true] %s15
      %s17 = sshll.u32 [#allocation2], 4
      %s18 = int_to_ptr.vmem [resolvable:$true] %s17
      %23 = dma.hbm_to_vmem [thread:$0]  %s16, 256, %s18, [#allocation3], 128, 128, 8
    $region5: #{tpu_custom_call.1} parent=1 // pred_fallthru
      _
    // Predicated region
    $region6: #{tpu_custom_call.1} parent=1 // pred_check
      _
    $region7: #{tpu_custom_call.1} parent=1 // pred_check_branch
      %25 = sbr.rel (0) target = $region9
    $region8: #{tpu_custom_call.1} parent=1 // pred_region
      %27 = vsyncadd [#allocation6], 0
      %s28 = sshll.u32 %s1, 4
      %s29 = int_to_ptr.hbm [resolvable:$true] %s28
      %s30 = sshll.u32 [#allocation5], 4
      %s31 = int_to_ptr.vmem [resolvable:$true] %s30
      %36 = dma.hbm_to_vmem [thread:$0]  %s29, 512, %s31, [#allocation6], 128, 128, 8
    $region9: #{tpu_custom_call.1} parent=1 // pred_fallthru
      _
    // Predicated region
    $region10: #{tpu_custom_call.1} parent=1 // pred_check
      _
    $region11: #{tpu_custom_call.1} parent=1 // pred_check_branch
      %38 = sbr.rel (0) target = $region13
    $region12: #{tpu_custom_call.1} parent=1 // pred_region
      _
    $region13: #{tpu_custom_call.1} parent=1 // pred_fallthru
      _
    // Predicated region
    $region14: #{tpu_custom_call.1} parent=1 // pred_check
      _
    $region15: #{tpu_custom_call.1} parent=1 // pred_check_branch
      %40 = sbr.rel (0) target = $region17
    $region16: #{tpu_custom_call.1} parent=1 // pred_region
      %42 = dma.done [#allocation3], 256
    $region17: #{tpu_custom_call.1} parent=1 // pred_fallthru
      _
    // Predicated region
    $region18: #{tpu_custom_call.1} parent=1 // pred_check
      _
    $region19: #{tpu_custom_call.1} parent=1 // pred_check_branch
      %44 = sbr.rel (0) target = $region21
    $region20: #{tpu_custom_call.1} parent=1 // pred_region
      %46 = dma.done [#allocation6], 512
    $region21: #{tpu_custom_call.1} parent=1 // pred_fallthru
      _
    %v47 = vld [vmem:[#allocation2] sm:$0xff]
    %v48 = vld [vmem:[#allocation2 + $0x8] sm:$0xff]
    %v49 = vld [vmem:[#allocation5] sm:$0xff]
    %v50 = vld [vmem:[#allocation5 + $0x8] sm:$0xff]
    %v51 = vld [vmem:[#allocation5 + $0x10] sm:$0xff]
    %v52 = vld [vmem:[#allocation5 + $0x18] sm:$0xff]
    %v53 = vld [vmem:[%s2] sm:$0x1]
    %v55 = vperm.slane %v53, 0
    %vm57 = vcmask 261120
    %v59 = vsel %vm57, %v47, 0
    %v62 = vsel %vm57, %v48, 0
    %64 = vmatpush.msra.mxu0 0.0
    %65 = vmatpush.msra.mxu0 0.0
    %66 = vmatpush.msra.mxu0 0.0
    %67 = vmatpush.msra.mxu0 0.0
    %68 = vmatpush.msra.mxu0 0.0
    %69 = vmatpush.msra.mxu0 0.0
    %70 = vmatpush.msra.mxu0 0.0
    %71 = vmatpush.msra.mxu0 0.0
    %72 = vmatpush.msra.mxu0 0.0
    %73 = vmatpush.msra.mxu0 0.0
    %74 = vmatpush.msra.mxu0 0.0
    %75 = vmatpush.msra.mxu0 0.0
    %76 = vmatpush.msra.mxu0 %v52
    %77 = vmatpush.msra.mxu0 %v51
    %78 = vmatpush.msra.mxu0 %v50
    %79 = vmatpush.msra.mxu0 %v49
    %80 = vmatmul.f32.gmra.mxu0 %v59
    %v81 = vpop.f32.mrf.mxu0
    %v82 = vadd.f32 %v55, %v81
    %83 = vmatmul.f32.gmra.mxu0 %v62
    %v84 = vpop.f32.mrf.mxu0
    %v85 = vadd.f32 %v55, %v84
    %86 = vdwg.mxu0
    %87 = vst [vmem:[#allocation7] sm:$0xff] %v82
    %88 = vst [vmem:[#allocation7 + $0x8] sm:$0xff] %v85
    // Predicated region
    $region22: #{tpu_custom_call.1} parent=1 // pred_check
      _
    $region23: #{tpu_custom_call.1} parent=1 // pred_check_branch
      %90 = sbr.rel (0) target = $region25
    $region24: #{tpu_custom_call.1} parent=1 // pred_region
      %92 = vsyncadd [#allocation4], 0
      %s93 = sshll.u32 [#allocation7], 4
      %s94 = int_to_ptr.vmem [resolvable:$true] %s93
      %s95 = sshll.u32 %s3, 4
      %s96 = int_to_ptr.hbm [resolvable:$true] %s95
      %101 = dma.vmem_to_hbm [thread:$0]  %s94, 256, %s96, [#allocation4], 128, 128, 8
    $region25: #{tpu_custom_call.1} parent=1 // pred_fallthru
      _
    // Predicated region
    $region26: #{tpu_custom_call.1} parent=1 // pred_check
      _
    $region27: #{tpu_custom_call.1} parent=1 // pred_check_branch
      %103 = sbr.rel (0) target = $region29
    $region28: #{tpu_custom_call.1} parent=1 // pred_region
      %105 = dma.done [#allocation4], 256
    $region29: #{tpu_custom_call.1} parent=1 // pred_fallthru
      _
    %106 = vsyncpa [#allocation3], 1
    %107 = vsyncpa [#allocation6], 1
    %108 = vsyncpa [#allocation4], 1

</llo_original>
